<compile_context>
chip_gen: v6e
topology: v6e:2x2x1
jax: 0.10.0
libtpu: 0.0.40
codegen_flags: <defaults>
</compile_context>

<pallas_src>
import functools

import jax
import jax.numpy as jnp
from jax.experimental import pallas as pl
from jax.experimental.pallas import tpu as pltpu


LANE = 128


def _round_up(v, m):
    return ((v + m - 1) // m) * m


def _ppg_kernel(mu_start, action_dim,
                x_ref,
                wrep_ref, brep_ref,
                wh_ref, bh_ref,
                wout_ref, bout_ref,
                out_ref):
    x = x_ref[...]

    # fused representations: [actor_state | critic_state] in one MXU pass.
    # padded lanes are exactly zero (zero weight cols, zero bias, ReLU(0)=0).
    s = jnp.maximum(
        jnp.dot(x, wrep_ref[...], preferred_element_type=jnp.float32)
        + brep_ref[...], 0.0)

    # fused hidden layers: block-structured [w_a1 | w_c1 | w_x1] slab
    # (actor & aux-critic read the actor-state rows, critic reads critic-state rows)
    h = jnp.maximum(
        jnp.dot(s.astype(wh_ref.dtype), wh_ref[...],
                preferred_element_type=jnp.float32)
        + bh_ref[...], 0.0)

    # fused heads: columns land directly at lanes [mu_start : mu_start+A+2);
    # all other columns of W_out / b_out are zero.
    head = (jnp.dot(h.astype(wout_ref.dtype), wout_ref[...],
                    preferred_element_type=jnp.float32)
            + bout_ref[...])

    lane = jax.lax.broadcasted_iota(jnp.int32, head.shape, 1)
    is_mu = (lane >= mu_start) & (lane < mu_start + action_dim)
    head = jnp.where(is_mu, jnp.tanh(head), head)   # tanh only on mu lanes

    # single lane-dense packed output: state lanes come from s (zero elsewhere),
    # head lanes come from `head` (zero elsewhere) -> plain add packs them.
    out_ref[...] = s + head


def pack_params(params, *, use_bf16=False):
    """Fuse / pad raw per-layer params into MXU-friendly 128-aligned slabs."""
    w_rep_a = params["w_rep_a"]
    obs_dim, state_dim = w_rep_a.shape
    H = params["w_a1"].shape[1]
    action_dim = params["w_a2"].shape[1]

    mu_start = 2 * state_dim
    P = _round_up(mu_start + action_dim + 2, LANE)      # packed lane width
    h3_p = _round_up(3 * H, LANE)
    w_dtype = jnp.bfloat16 if use_bf16 else jnp.float32

    # --- fused representation slab: [w_rep_actor | w_rep_critic], obs rows unpadded ---
    w_rep = jnp.zeros((obs_dim, P), jnp.float32)
    w_rep = w_rep.at[:, 0:state_dim].set(params["w_rep_a"])
    w_rep = w_rep.at[:, state_dim:mu_start].set(params["w_rep_c"])
    b_rep = jnp.zeros((1, P), jnp.float32)
    b_rep = b_rep.at[0, 0:state_dim].set(params["b_rep_a"][0])
    b_rep = b_rep.at[0, state_dim:mu_start].set(params["b_rep_c"][0])

    # --- fused hidden slab (block-structured): actor/aux use actor-state rows,
    #     critic uses critic-state rows ---
    w_h = jnp.zeros((P, h3_p), jnp.float32)
    w_h = w_h.at[0:state_dim, 0:H].set(params["w_a1"])
    w_h = w_h.at[state_dim:mu_start, H:2 * H].set(params["w_c1"])
    w_h = w_h.at[0:state_dim, 2 * H:3 * H].set(params["w_x1"])
    b_h = jnp.zeros((1, h3_p), jnp.float32)
    b_h = b_h.at[0, 0:H].set(params["b_a1"][0])
    b_h = b_h.at[0, H:2 * H].set(params["b_c1"][0])
    b_h = b_h.at[0, 2 * H:3 * H].set(params["b_x1"][0])

    # --- fused head slab: columns placed at the packed output lanes ---
    w_out = jnp.zeros((h3_p, P), jnp.float32)
    w_out = w_out.at[0:H, mu_start:mu_start + action_dim].set(params["w_a2"])
    w_out = w_out.at[H:2 * H, mu_start + action_dim].set(params["w_c2"][:, 0])
    w_out = w_out.at[2 * H:3 * H, mu_start + action_dim + 1].set(params["w_x2"][:, 0])
    b_out = jnp.zeros((1, P), jnp.float32)
    b_out = b_out.at[0, mu_start:mu_start + action_dim].set(params["b_a2"][0])
    b_out = b_out.at[0, mu_start + action_dim].set(params["b_c2"][0, 0])
    b_out = b_out.at[0, mu_start + action_dim + 1].set(params["b_x2"][0, 0])

    # std = exp(logstd): batch-independent, computed outside the kernel.
    std = jnp.exp(params["logstd"])[0]

    return dict(w_rep=w_rep.astype(w_dtype), b_rep=b_rep,
                w_h=w_h.astype(w_dtype), b_h=b_h,
                w_out=w_out.astype(w_dtype), b_out=b_out,
                std=std)


def _choose_tile(B):
    """Batch tile: multiple of 8, <=1024, >=2 grid steps when possible (v7x 2 TCs)."""
    b8 = _round_up(max(B, 1), 8)
    tile = min(1024, max(8, _round_up(pl.cdiv(b8, 2), 8)))
    b_pad = _round_up(B, tile)
    return tile, b_pad


@functools.partial(jax.jit, static_argnames=("state_dim", "action_dim"))
def ppg_actor_critic_forward(x, packed, *, state_dim, action_dim):
    """Returns (policy_state, critic_state, mu, std, v, aux_v)."""
    B, obs_dim = x.shape
    P = packed["w_rep"].shape[1]
    h3_p = packed["w_h"].shape[1]
    mu_start = 2 * state_dim

    tile_b, b_pad = _choose_tile(B)
    n_tiles = b_pad // tile_b

    x = x.astype(packed["w_rep"].dtype)
    if b_pad != B:                               # pad only a ragged last tile
        x = jnp.pad(x, ((0, b_pad - B), (0, 0)))

    kernel = functools.partial(_ppg_kernel, mu_start, action_dim)

    def w_spec(shape):
        # weights/biases stay VMEM-resident (constant index map)
        # TODO(synk): pipeline_mode=pl.Buffered(1) would drop their 2nd buffer
        # (tiny VMEM win on v7x) once single-buffering is verified on-target.
        return pl.BlockSpec(shape, lambda i: (0, 0))

    in_specs = [
        pl.BlockSpec((tile_b, obs_dim), lambda i: (i, 0)),   # x tile, K unpadded
        w_spec((obs_dim, P)), w_spec((1, P)),                # fused rep
        w_spec((P, h3_p)), w_spec((1, h3_p)),                # fused hidden
        w_spec((h3_p, P)), w_spec((1, P)),                   # fused heads
    ]
    out_specs = pl.BlockSpec((tile_b, P), lambda i: (i, 0))  # packed slab
    out_shape = jax.ShapeDtypeStruct((b_pad, P), jnp.float32)

    elem = jnp.dtype(packed["w_rep"].dtype).itemsize
    flops = 2 * b_pad * (obs_dim * P + P * h3_p + h3_p * P)
    bytes_accessed = (elem * (b_pad * obs_dim + obs_dim * P + P * h3_p + h3_p * P)
                      + 4 * (b_pad * P + 2 * P + h3_p))
    cost = pl.CostEstimate(flops=flops,
                           transcendentals=b_pad * action_dim,
                           bytes_accessed=bytes_accessed)

    packed_out = pl.pallas_call(
        kernel,
        out_shape=out_shape,
        grid=(n_tiles,),
        in_specs=in_specs,
        out_specs=out_specs,
        compiler_params=pltpu.CompilerParams(
            dimension_semantics=("parallel",)),
        cost_estimate=cost,
    )(x, packed["w_rep"], packed["b_rep"], packed["w_h"], packed["b_h"],
      packed["w_out"], packed["b_out"])

    policy_state = packed_out[:B, 0:state_dim]
    critic_state = packed_out[:B, state_dim:mu_start]
    mu = packed_out[:B, mu_start:mu_start + action_dim]
    v = packed_out[:B, mu_start + action_dim]           # CriticNet -> model(x)[:, 0]
    aux_v = packed_out[:B, mu_start + action_dim + 1]
    std = packed["std"]
    return policy_state, critic_state, mu, std, v, aux_v


def init_params(key, obs_dim, state_dim, hidden, action_dim):
    ks = jax.random.split(key, 10)

    def lin(k, fan_in, fan_out):
        w = 0.1 * jax.random.normal(k, (fan_in, fan_out), jnp.float32)
        b = jnp.zeros((1, fan_out), jnp.float32)
        return w, b

    w_rep, b_rep = lin(ks[0], obs_dim, state_dim)
    w_a1, b_a1 = lin(ks[1], state_dim, hidden)
    w_a2, b_a2 = lin(ks[2], hidden, action_dim)
    w_c1, b_c1 = lin(ks[3], state_dim, hidden)
    w_c2, b_c2 = lin(ks[4], hidden, 1)
    w_x1, b_x1 = lin(ks[5], state_dim, hidden)
    w_x2, b_x2 = lin(ks[6], hidden, 1)
    logstd = -jnp.ones((1, action_dim), jnp.float32)   # nn.Parameter(-ones)
    # critic_representation = copy.deepcopy(representation): independent copy,
    # identical values at init (kernel supports them diverging after training).
    return dict(w_rep_a=w_rep, b_rep_a=b_rep,
                w_rep_c=jnp.array(w_rep), b_rep_c=jnp.array(b_rep),
                w_a1=w_a1, b_a1=b_a1, w_a2=w_a2, b_a2=b_a2, logstd=logstd,
                w_c1=w_c1, b_c1=b_c1, w_c2=w_c2, b_c2=b_c2,
                w_x1=w_x1, b_x1=b_x1, w_x2=w_x2, b_x2=b_x2)


def _reference(x, p):
    relu = lambda t: jnp.maximum(t, 0.0)
    a_state = relu(x @ p["w_rep_a"] + p["b_rep_a"])
    c_state = relu(x @ p["w_rep_c"] + p["b_rep_c"])
    mu = jnp.tanh(relu(a_state @ p["w_a1"] + p["b_a1"]) @ p["w_a2"] + p["b_a2"])
    std = jnp.exp(p["logstd"])[0]
    v = (relu(c_state @ p["w_c1"] + p["b_c1"]) @ p["w_c2"] + p["b_c2"])[:, 0]
    aux_v = (relu(a_state @ p["w_x1"] + p["b_x1"]) @ p["w_x2"] + p["b_x2"])[:, 0]
    return a_state, c_state, mu, std, v, aux_v


if __name__ == "__main__":
    B, obs_dim, state_dim, hidden, action_dim = 8, 16, 32, 32, 4

    key = jax.random.PRNGKey(0)
    k_x, k_p = jax.random.split(key)
    x = jax.random.normal(k_x, (B, obs_dim), jnp.float32)
    params = init_params(k_p, obs_dim, state_dim, hidden, action_dim)
    packed = pack_params(params, use_bf16=False)   # bf16 operands optional (v6e/v7x)

    outs = ppg_actor_critic_forward(x, packed,
                                    state_dim=state_dim, action_dim=action_dim)
    outs = jax.block_until_ready(outs)

    refs = _reference(x, params)
    for o, r in zip(outs, refs):
        assert o.shape == r.shape, (o.shape, r.shape)
        assert jnp.allclose(o, r, atol=1e-5, rtol=1e-5), \
            float(jnp.max(jnp.abs(o - r)))

    print("KERNEL_OK")
</pallas_src>

<mosaic_0001>
module attributes {stable_mosaic.version = 11 : i64} {
  func.func @_ppg_kernel(%arg0: i32, %arg1: memref<8x16xf32, #tpu.memory_space<vmem>>, %arg2: memref<16x128xf32, #tpu.memory_space<vmem>>, %arg3: memref<1x128xf32, #tpu.memory_space<vmem>>, %arg4: memref<128x128xf32, #tpu.memory_space<vmem>>, %arg5: memref<1x128xf32, #tpu.memory_space<vmem>>, %arg6: memref<128x128xf32, #tpu.memory_space<vmem>>, %arg7: memref<1x128xf32, #tpu.memory_space<vmem>>, %arg8: memref<8x128xf32, #tpu.memory_space<vmem>>) attributes {dimension_semantics = [#tpu.dimension_semantics<parallel>], iteration_bounds = array<i64: 1>, scalar_prefetch = 0 : i64, scratch_operands = 0 : i64, tpu.core_type = #tpu.core_type<tc>, window_params = [{transform_indices = @transform_0, window_bounds = array<i64: 8, 16>}, {pipeline_mode = #tpu.pipeline_mode<synchronous>, transform_indices = @transform_1, window_bounds = array<i64: 16, 128>}, {pipeline_mode = #tpu.pipeline_mode<synchronous>, transform_indices = @transform_2, window_bounds = array<i64: 1, 128>}, {pipeline_mode = #tpu.pipeline_mode<synchronous>, transform_indices = @transform_3, window_bounds = array<i64: 128, 128>}, {pipeline_mode = #tpu.pipeline_mode<synchronous>, transform_indices = @transform_4, window_bounds = array<i64: 1, 128>}, {pipeline_mode = #tpu.pipeline_mode<synchronous>, transform_indices = @transform_5, window_bounds = array<i64: 128, 128>}, {pipeline_mode = #tpu.pipeline_mode<synchronous>, transform_indices = @transform_6, window_bounds = array<i64: 1, 128>}, {transform_indices = @transform_7, window_bounds = array<i64: 8, 128>}]} {
    %c0 = arith.constant 0 : index
    %c0_0 = arith.constant 0 : index
    %0 = vector.load %arg1[%c0, %c0_0] : memref<8x16xf32, #tpu.memory_space<vmem>>, vector<8x16xf32>
    %c0_1 = arith.constant 0 : index
    %c0_2 = arith.constant 0 : index
    %1 = vector.load %arg2[%c0_1, %c0_2] : memref<16x128xf32, #tpu.memory_space<vmem>>, vector<16x128xf32>
    %cst = arith.constant dense<0.000000e+00> : vector<8x128xf32>
    %2 = tpu.matmul %0, %1, %cst {dimension_numbers = #tpu.dot_dimension_numbers<[1], [0], [0], [1], [0, 0, 1, 1], [], []>} : vector<8x16xf32>, vector<16x128xf32>, vector<8x128xf32> -> vector<8x128xf32>
    %c0_3 = arith.constant 0 : index
    %c0_4 = arith.constant 0 : index
    %3 = vector.load %arg3[%c0_3, %c0_4] : memref<1x128xf32, #tpu.memory_space<vmem>>, vector<1x128xf32>
    %4 = vector.broadcast %3 : vector<1x128xf32> to vector<8x128xf32>
    %5 = arith.addf %2, %4 : vector<8x128xf32>
    %cst_5 = arith.constant 0.000000e+00 : f32
    %6 = vector.broadcast %cst_5 : f32 to vector<8x128xf32>
    %7 = arith.maximumf %5, %6 : vector<8x128xf32>
    %c0_6 = arith.constant 0 : index
    %c0_7 = arith.constant 0 : index
    %8 = vector.load %arg4[%c0_6, %c0_7] : memref<128x128xf32, #tpu.memory_space<vmem>>, vector<128x128xf32>
    %cst_8 = arith.constant dense<0.000000e+00> : vector<8x128xf32>
    %9 = tpu.matmul %7, %8, %cst_8 {dimension_numbers = #tpu.dot_dimension_numbers<[1], [0], [0], [1], [0, 0, 1, 1], [], []>} : vector<8x128xf32>, vector<128x128xf32>, vector<8x128xf32> -> vector<8x128xf32>
    %c0_9 = arith.constant 0 : index
    %c0_10 = arith.constant 0 : index
    %10 = vector.load %arg5[%c0_9, %c0_10] : memref<1x128xf32, #tpu.memory_space<vmem>>, vector<1x128xf32>
    %11 = vector.broadcast %10 : vector<1x128xf32> to vector<8x128xf32>
    %12 = arith.addf %9, %11 : vector<8x128xf32>
    %cst_11 = arith.constant 0.000000e+00 : f32
    %13 = vector.broadcast %cst_11 : f32 to vector<8x128xf32>
    %14 = arith.maximumf %12, %13 : vector<8x128xf32>
    %c0_12 = arith.constant 0 : index
    %c0_13 = arith.constant 0 : index
    %15 = vector.load %arg6[%c0_12, %c0_13] : memref<128x128xf32, #tpu.memory_space<vmem>>, vector<128x128xf32>
    %cst_14 = arith.constant dense<0.000000e+00> : vector<8x128xf32>
    %16 = tpu.matmul %14, %15, %cst_14 {dimension_numbers = #tpu.dot_dimension_numbers<[1], [0], [0], [1], [0, 0, 1, 1], [], []>} : vector<8x128xf32>, vector<128x128xf32>, vector<8x128xf32> -> vector<8x128xf32>
    %c0_15 = arith.constant 0 : index
    %c0_16 = arith.constant 0 : index
    %17 = vector.load %arg7[%c0_15, %c0_16] : memref<1x128xf32, #tpu.memory_space<vmem>>, vector<1x128xf32>
    %18 = vector.broadcast %17 : vector<1x128xf32> to vector<8x128xf32>
    %19 = arith.addf %16, %18 : vector<8x128xf32>
    %20 = tpu.iota {dimensions = array<i32: 1>} : vector<8x128xi32>
    %c64_i32 = arith.constant 64 : i32
    %21 = vector.broadcast %c64_i32 : i32 to vector<8x128xi32>
    %22 = arith.cmpi sge, %20, %21 : vector<8x128xi32>
    %c68_i32 = arith.constant 68 : i32
    %23 = vector.broadcast %c68_i32 : i32 to vector<8x128xi32>
    %24 = arith.cmpi slt, %20, %23 : vector<8x128xi32>
    %25 = arith.andi %22, %24 : vector<8x128xi1>
    %26 = math.tanh %19 : vector<8x128xf32>
    %27 = arith.select %25, %26, %19 : vector<8x128xi1>, vector<8x128xf32>
    %28 = arith.addf %7, %27 : vector<8x128xf32>
    %c0_17 = arith.constant 0 : index
    %c0_18 = arith.constant 0 : index
    %29 = vector.load %arg8[%c0_17, %c0_18] : memref<8x128xf32, #tpu.memory_space<vmem>>, vector<8x128xf32>
    tpu.vector_store %arg8[%c0_17, %c0_18], %28 {strides = array<i32>} : memref<8x128xf32, #tpu.memory_space<vmem>>, vector<8x128xf32>,
    return
  }
  func.func @transform_0(%arg0: i32) -> (i32, i32) {
    %c0_i32 = arith.constant 0 : i32
    %c0_i32_0 = arith.constant 0 : i32
    return %arg0, %c0_i32 : i32, i32
  }
  func.func @transform_1(%arg0: i32) -> (i32, i32) {
    %c0_i32 = arith.constant 0 : i32
    %c0_i32_0 = arith.constant 0 : i32
    %c0_i32_1 = arith.constant 0 : i32
    return %c0_i32, %c0_i32_0 : i32, i32
  }
  func.func @transform_2(%arg0: i32) -> (i32, i32) {
    %c0_i32 = arith.constant 0 : i32
    %c0_i32_0 = arith.constant 0 : i32
    %c0_i32_1 = arith.constant 0 : i32
    return %c0_i32, %c0_i32_0 : i32, i32
  }
  func.func @transform_3(%arg0: i32) -> (i32, i32) {
    %c0_i32 = arith.constant 0 : i32
    %c0_i32_0 = arith.constant 0 : i32
    %c0_i32_1 = arith.constant 0 : i32
    return %c0_i32, %c0_i32_0 : i32, i32
  }
  func.func @transform_4(%arg0: i32) -> (i32, i32) {
    %c0_i32 = arith.constant 0 : i32
    %c0_i32_0 = arith.constant 0 : i32
    %c0_i32_1 = arith.constant 0 : i32
    return %c0_i32, %c0_i32_0 : i32, i32
  }
  func.func @transform_5(%arg0: i32) -> (i32, i32) {
    %c0_i32 = arith.constant 0 : i32
    %c0_i32_0 = arith.constant 0 : i32
    %c0_i32_1 = arith.constant 0 : i32
    return %c0_i32, %c0_i32_0 : i32, i32
  }
  func.func @transform_6(%arg0: i32) -> (i32, i32) {
    %c0_i32 = arith.constant 0 : i32
    %c0_i32_0 = arith.constant 0 : i32
    %c0_i32_1 = arith.constant 0 : i32
    return %c0_i32, %c0_i32_0 : i32, i32
  }
  func.func @transform_7(%arg0: i32) -> (i32, i32) {
    %c0_i32 = arith.constant 0 : i32
    %c0_i32_0 = arith.constant 0 : i32
    return %arg0, %c0_i32 : i32, i32
  }
}

</mosaic_0001>

<llo_original>
// kernel: ppg_actor_critic_forward.1
$region0: #{ppg_actor_critic_forward.1}
  #allocation0 [shape = 'u32[]', space=smem, size = 0x4, offset = 0x4, fixed_abs, tag = 'smem constant byte address 0x4 - core index']
  #allocation1 [shape = 'u32[144,128]{1,0:T(1,128)}', space=vmem, size = 0x12000, scoped, tag = 'internal scratch']
  %s0 = inlined_call_operand.hbm [shape: f32[8,16], index: 0, kind: input, shape index: {}]
  %s1 = inlined_call_operand.hbm [shape: f32[16,128], index: 1, kind: input, shape index: {}]
  %s2 = inlined_call_operand.vmem [shape: f32[1,128], index: 2, kind: input, shape index: {}]
  %s3 = inlined_call_operand.hbm [shape: f32[128,128], index: 3, kind: input, shape index: {}]
  %s4 = inlined_call_operand.hbm [shape: f32[1,128], index: 4, kind: input, shape index: {}]
  %s5 = inlined_call_operand.hbm [shape: f32[128,128], index: 5, kind: input, shape index: {}]
  %s6 = inlined_call_operand.vmem [shape: f32[1,128], index: 6, kind: input, shape index: {}]
  %s7 = inlined_call_operand.vmem [shape: f32[8,128], index: 7, kind: output, shape index: {}]
  %s8 = sld [smem:[#allocation0]]
  $region58: #{ppg_actor_critic_forward.1} parent=0
    _
  %s10 = ssub.s32 1, %s8
  %s11 = scalar_select 0, %s10, %s8
  $region1: #{ppg_actor_critic_forward.1} parent=0
    #allocation2 [shape = 'u8[4096]{0}', space=vmem, size = 0x1000, scoped, tag = 'input window, operand 0, single buffered']
    #allocation3 [shape = 's32[1]{0}', space=sflag, size = 0x4, scoped, tag = 'scoped memory for ppg_actor_critic_forward.1']
    #allocation4 [shape = 'u8[8192]{0}', space=vmem, size = 0x2000, scoped, tag = 'input window, operand 1, single buffered']
    #allocation5 [shape = 's32[1]{0}', space=sflag, size = 0x4, scoped, tag = 'scoped memory for ppg_actor_critic_forward.1']
    #allocation6 [shape = 'u8[65536]{0}', space=vmem, size = 0x10000, scoped, tag = 'input window, operand 3, single buffered']
    #allocation7 [shape = 'u8[512]{0}', space=vmem, size = 0x400, scoped, tag = 'input window, operand 4, single buffered']
    #allocation8 [shape = 's32[1]{0}', space=sflag, size = 0x4, scoped, tag = 'scoped memory for ppg_actor_critic_forward.1']
    #allocation9 [shape = 'u8[65536]{0}', space=vmem, size = 0x10000, scoped, tag = 'input window, operand 5, single buffered']
    %12 = vsyncpa [#allocation3], 0
    %13 = vsyncpa [#allocation5], 0
    %14 = vsyncpa [#allocation8], 0
    // Predicated region
    $region2: #{ppg_actor_critic_forward.1} parent=1 // pred_check
      _
    $region3: #{ppg_actor_critic_forward.1} parent=1 // pred_check_branch
      %16 = sbr.rel (0) target = $region5
    $region4: #{ppg_actor_critic_forward.1} parent=1 // pred_region
      %s18 = ssub.s32 128, 128
      %19 = vsyncadd [#allocation3], %s18
      %s21 = sshll.u32 [#allocation2], 4
      %s22 = int_to_ptr.vmem [resolvable:$true] %s21
      %24 = dma.hbm_to_vmem [thread:$0]  %s0, 128, %s22, [#allocation3]
    $region5: #{ppg_actor_critic_forward.1} parent=1 // pred_fallthru
      _
    // Predicated region
    $region6: #{ppg_actor_critic_forward.1} parent=1 // pred_check
      _
    $region7: #{ppg_actor_critic_forward.1} parent=1 // pred_check_branch
      %26 = sbr.rel (0) target = $region9
    $region8: #{ppg_actor_critic_forward.1} parent=1 // pred_region
      %s28 = ssub.s32 256, 256
      %29 = vsyncadd [#allocation5], %s28
      %s30 = sshll.u32 [#allocation4], 4
      %s31 = int_to_ptr.vmem [resolvable:$true] %s30
      %36 = dma.hbm_to_vmem [thread:$0]  %s1, 256, %s31, [#allocation5], 128, 128, 8
    $region9: #{ppg_actor_critic_forward.1} parent=1 // pred_fallthru
      _
    // Predicated region
    $region10: #{ppg_actor_critic_forward.1} parent=1 // pred_check
      _
    $region11: #{ppg_actor_critic_forward.1} parent=1 // pred_check_branch
      %38 = sbr.rel (0) target = $region13
    $region12: #{ppg_actor_critic_forward.1} parent=1 // pred_region
      _
    $region13: #{ppg_actor_critic_forward.1} parent=1 // pred_fallthru
      _
    // Predicated region
    $region14: #{ppg_actor_critic_forward.1} parent=1 // pred_check
      _
    $region15: #{ppg_actor_critic_forward.1} parent=1 // pred_check_branch
      %40 = sbr.rel (0) target = $region17
    $region16: #{ppg_actor_critic_forward.1} parent=1 // pred_region
      %s42 = ssub.s32 2048, 2048
      %43 = vsyncadd [#allocation5], %s42
      %s44 = sshll.u32 [#allocation6], 4
      %s45 = int_to_ptr.vmem [resolvable:$true] %s44
      %50 = dma.hbm_to_vmem [thread:$0]  %s3, 2048, %s45, [#allocation5], 128, 128, 8
    $region17: #{ppg_actor_critic_forward.1} parent=1 // pred_fallthru
      _
    // Predicated region
    $region18: #{ppg_actor_critic_forward.1} parent=1 // pred_check
      _
    $region19: #{ppg_actor_critic_forward.1} parent=1 // pred_check_branch
      %52 = sbr.rel (0) target = $region21
    $region20: #{ppg_actor_critic_forward.1} parent=1 // pred_region
      %s54 = ssub.s32 16, 16
      %55 = vsyncadd [#allocation8], %s54
      %s57 = sshll.u32 [#allocation7], 4
      %s58 = int_to_ptr.vmem [resolvable:$true] %s57
      %60 = dma.hbm_to_vmem [thread:$0]  %s4, 16, %s58, [#allocation8]
    $region21: #{ppg_actor_critic_forward.1} parent=1 // pred_fallthru
      _
    // Predicated region
    $region22: #{ppg_actor_critic_forward.1} parent=1 // pred_check
      _
    $region23: #{ppg_actor_critic_forward.1} parent=1 // pred_check_branch
      %62 = sbr.rel (0) target = $region25
    $region24: #{ppg_actor_critic_forward.1} parent=1 // pred_region
      %s64 = ssub.s32 2048, 2048
      %65 = vsyncadd [#allocation8], %s64
      %s66 = sshll.u32 [#allocation9], 4
      %s67 = int_to_ptr.vmem [resolvable:$true] %s66
      %72 = dma.hbm_to_vmem [thread:$0]  %s5, 2048, %s67, [#allocation8], 128, 128, 8
    $region25: #{ppg_actor_critic_forward.1} parent=1 // pred_fallthru
      _
    // Predicated region
    $region26: #{ppg_actor_critic_forward.1} parent=1 // pred_check
      _
    $region27: #{ppg_actor_critic_forward.1} parent=1 // pred_check_branch
      %74 = sbr.rel (0) target = $region29
    $region28: #{ppg_actor_critic_forward.1} parent=1 // pred_region
      _
    $region29: #{ppg_actor_critic_forward.1} parent=1 // pred_fallthru
      _
    // Predicated region
    $region30: #{ppg_actor_critic_forward.1} parent=1 // pred_check
      _
    $region31: #{ppg_actor_critic_forward.1} parent=1 // pred_check_branch
      %76 = sbr.rel (0) target = $region33
    $region32: #{ppg_actor_critic_forward.1} parent=1 // pred_region
      %77 = dma.done [#allocation3], 128
    $region33: #{ppg_actor_critic_forward.1} parent=1 // pred_fallthru
      _
    // Predicated region
    $region34: #{ppg_actor_critic_forward.1} parent=1 // pred_check
      _
    $region35: #{ppg_actor_critic_forward.1} parent=1 // pred_check_branch
      %79 = sbr.rel (0) target = $region37
    $region36: #{ppg_actor_critic_forward.1} parent=1 // pred_region
      %80 = dma.done [#allocation5], 256
    $region37: #{ppg_actor_critic_forward.1} parent=1 // pred_fallthru
      _
    // Predicated region
    $region38: #{ppg_actor_critic_forward.1} parent=1 // pred_check
      _
    $region39: #{ppg_actor_critic_forward.1} parent=1 // pred_check_branch
      %82 = sbr.rel (0) target = $region41
    $region40: #{ppg_actor_critic_forward.1} parent=1 // pred_region
      %83 = dma.done [#allocation5], 2048
    $region41: #{ppg_actor_critic_forward.1} parent=1 // pred_fallthru
      _
    // Predicated region
    $region42: #{ppg_actor_critic_forward.1} parent=1 // pred_check
      _
    $region43: #{ppg_actor_critic_forward.1} parent=1 // pred_check_branch
      %85 = sbr.rel (0) target = $region45
    $region44: #{ppg_actor_critic_forward.1} parent=1 // pred_region
      %86 = dma.done [#allocation8], 16
    $region45: #{ppg_actor_critic_forward.1} parent=1 // pred_fallthru
      _
    // Predicated region
    $region46: #{ppg_actor_critic_forward.1} parent=1 // pred_check
      _
    $region47: #{ppg_actor_critic_forward.1} parent=1 // pred_check_branch
      %88 = sbr.rel (0) target = $region49
    $region48: #{ppg_actor_critic_forward.1} parent=1 // pred_region
      %89 = dma.done [#allocation8], 2048
    $region49: #{ppg_actor_critic_forward.1} parent=1 // pred_fallthru
      _
    %v90 = vld [vmem:[#allocation2] sm:$0xff]
    %v91 = vld [vmem:[#allocation4] sm:$0xff]
    %v92 = vld [vmem:[#allocation4 + $0x8] sm:$0xff]
    %v93 = vld [vmem:[%s2] sm:$0x1]
    %v95 = vlaneseq
    %v96 = vshrl.u32 %v95, 7
    %v97 = vsub.s32 0, %v96
    %v98 = vrot.slane %v93, %v97
    %vm100 = vcmask 130048
    %v102 = vsel %vm100, %v90, 0
    %104 = vmatprep.subr.mxu0 0.0
    %105 = vmatpush1.msra.mxu0 0.0
    %106 = vmatprep.subr.mxu0 0.0
    %107 = vmatpush1.msra.mxu0 0.0
    %108 = vmatprep.subr.mxu0 0.0
    %109 = vmatpush1.msra.mxu0 0.0
    %110 = vmatprep.subr.mxu0 0.0
    %111 = vmatpush1.msra.mxu0 0.0
    %112 = vmatprep.subr.mxu0 0.0
    %113 = vmatpush1.msra.mxu0 0.0
    %114 = vmatprep.subr.mxu0 0.0
    %115 = vmatpush1.msra.mxu0 0.0
    %116 = vmatprep.subr.mxu0 0.0
    %117 = vmatpush1.msra.mxu0 0.0
    %118 = vmatprep.subr.mxu0 0.0
    %119 = vmatpush1.msra.mxu0 0.0
    %120 = vmatprep.subr.mxu0 0.0
    %121 = vmatpush1.msra.mxu0 0.0
    %122 = vmatprep.subr.mxu0 0.0
    %123 = vmatpush1.msra.mxu0 0.0
    %124 = vmatprep.subr.mxu0 0.0
    %125 = vmatpush1.msra.mxu0 0.0
    %126 = vmatprep.subr.mxu0 0.0
    %127 = vmatpush1.msra.mxu0 0.0
    %128 = vmatprep.subr.mxu0 0.0
    %129 = vmatpush1.msra.mxu0 0.0
    %130 = vmatprep.subr.mxu0 0.0
    %131 = vmatpush1.msra.mxu0 0.0
    %132 = vmatprep.subr.mxu0 0.0
    %133 = vmatpush1.msra.mxu0 %v92
    %134 = vmatprep.subr.mxu0 0.0
    %135 = vmatpush1.msra.mxu0 %v91
    %136 = vmatprep.subr.mxu0 0.0
    %137 = vmatpush2.msra.mxu0 0.0
    %138 = vmatprep.subr.mxu0 0.0
    %139 = vmatpush2.msra.mxu0 0.0
    %140 = vmatprep.subr.mxu0 0.0
    %141 = vmatpush2.msra.mxu0 0.0
    %142 = vmatprep.subr.mxu0 0.0
    %143 = vmatpush2.msra.mxu0 0.0
    %144 = vmatprep.subr.mxu0 0.0
    %145 = vmatpush2.msra.mxu0 0.0
    %146 = vmatprep.subr.mxu0 0.0
    %147 = vmatpush2.msra.mxu0 0.0
    %148 = vmatprep.subr.mxu0 0.0
    %149 = vmatpush2.msra.mxu0 0.0
    %150 = vmatprep.subr.mxu0 0.0
    %151 = vmatpush2.msra.mxu0 0.0
    %152 = vmatprep.subr.mxu0 0.0
    %153 = vmatpush2.msra.mxu0 0.0
    %154 = vmatprep.subr.mxu0 0.0
    %155 = vmatpush2.msra.mxu0 0.0
    %156 = vmatprep.subr.mxu0 0.0
    %157 = vmatpush2.msra.mxu0 0.0
    %158 = vmatprep.subr.mxu0 0.0
    %159 = vmatpush2.msra.mxu0 0.0
    %160 = vmatprep.subr.mxu0 0.0
    %161 = vmatpush2.msra.mxu0 0.0
    %162 = vmatprep.subr.mxu0 0.0
    %163 = vmatpush2.msra.mxu0 0.0
    %164 = vmatprep.subr.mxu0 0.0
    %165 = vmatpush2.msra.mxu0 0.0
    %166 = vmatprep.subr.mxu0 0.0
    %167 = vmatpush2.msra.mxu0 0.0
    %168 = vmatprep.mubr.f32.mxu0 0.0
    %169 = vmatmul.mubr.f32.gmra.mxu0 %v102
    %v170 = vpop.f32.mrf.mxu0
    %v171 = vadd.f32 %v98, %v170
    %v172 = vpop.f32.mrf.mxu0
    %173 = vdwg.mxu0
    %v174 = vmax.f32 %v171, 0.0
    %v175 = vld [vmem:[#allocation6] sm:$0xff]
    %v176 = vld [vmem:[#allocation6 + $0x8] sm:$0xff]
    %v177 = vld [vmem:[#allocation6 + $0x10] sm:$0xff]
    %v178 = vld [vmem:[#allocation6 + $0x18] sm:$0xff]
    %v179 = vld [vmem:[#allocation6 + $0x20] sm:$0xff]
    %v180 = vld [vmem:[#allocation6 + $0x28] sm:$0xff]
    %v181 = vld [vmem:[#allocation6 + $0x30] sm:$0xff]
    %v182 = vld [vmem:[#allocation6 + $0x38] sm:$0xff]
    %v183 = vld [vmem:[#allocation6 + $0x40] sm:$0xff]
    %v184 = vld [vmem:[#allocation6 + $0x48] sm:$0xff]
    %v185 = vld [vmem:[#allocation6 + $0x50] sm:$0xff]
    %v186 = vld [vmem:[#allocation6 + $0x58] sm:$0xff]
    %v187 = vld [vmem:[#allocation6 + $0x60] sm:$0xff]
    %v188 = vld [vmem:[#allocation6 + $0x68] sm:$0xff]
    %v189 = vld [vmem:[#allocation6 + $0x70] sm:$0xff]
    %v190 = vld [vmem:[#allocation6 + $0x78] sm:$0xff]
    %v191 = vld [vmem:[#allocation7] sm:$0x1]
    %v193 = vlaneseq
    %v194 = vshrl.u32 %v193, 7
    %v195 = vsub.s32 0, %v194
    %v196 = vrot.slane %v191, %v195
    %198 = vmatprep.subr.mxu0 0.0
    %199 = vmatpush1.msra.mxu0 %v190
    %200 = vmatprep.subr.mxu0 0.0
    %201 = vmatpush1.msra.mxu0 %v189
    %202 = vmatprep.subr.mxu0 0.0
    %203 = vmatpush1.msra.mxu0 %v188
    %204 = vmatprep.subr.mxu0 0.0
    %205 = vmatpush1.msra.mxu0 %v187
    %206 = vmatprep.subr.mxu0 0.0
    %207 = vmatpush1.msra.mxu0 %v186
    %208 = vmatprep.subr.mxu0 0.0
    %209 = vmatpush1.msra.mxu0 %v185
    %210 = vmatprep.subr.mxu0 0.0
    %211 = vmatpush1.msra.mxu0 %v184
    %212 = vmatprep.subr.mxu0 0.0
    %213 = vmatpush1.msra.mxu0 %v183
    %214 = vmatprep.subr.mxu0 0.0
    %215 = vmatpush1.msra.mxu0 %v182
    %216 = vmatprep.subr.mxu0 0.0
    %217 = vmatpush1.msra.mxu0 %v181
    %218 = vmatprep.subr.mxu0 0.0
    %219 = vmatpush1.msra.mxu0 %v180
    %220 = vmatprep.subr.mxu0 0.0
    %221 = vmatpush1.msra.mxu0 %v179
    %222 = vmatprep.subr.mxu0 0.0
    %223 = vmatpush1.msra.mxu0 %v178
    %224 = vmatprep.subr.mxu0 0.0
    %225 = vmatpush1.msra.mxu0 %v177
    %226 = vmatprep.subr.mxu0 0.0
    %227 = vmatpush1.msra.mxu0 %v176
    %228 = vmatprep.subr.mxu0 0.0
    %229 = vmatpush1.msra.mxu0 %v175
    %230 = vmatprep.subr.mxu0 0.0
    %231 = vmatpush2.msra.mxu0 0.0
    %232 = vmatprep.subr.mxu0 0.0
    %233 = vmatpush2.msra.mxu0 0.0
    %234 = vmatprep.subr.mxu0 0.0
    %235 = vmatpush2.msra.mxu0 0.0
    %236 = vmatprep.subr.mxu0 0.0
    %237 = vmatpush2.msra.mxu0 0.0
    %238 = vmatprep.subr.mxu0 0.0
    %239 = vmatpush2.msra.mxu0 0.0
    %240 = vmatprep.subr.mxu0 0.0
    %241 = vmatpush2.msra.mxu0 0.0
    %242 = vmatprep.subr.mxu0 0.0
    %243 = vmatpush2.msra.mxu0 0.0
    %244 = vmatprep.subr.mxu0 0.0
    %245 = vmatpush2.msra.mxu0 0.0
    %246 = vmatprep.subr.mxu0 0.0
    %247 = vmatpush2.msra.mxu0 0.0
    %248 = vmatprep.subr.mxu0 0.0
    %249 = vmatpush2.msra.mxu0 0.0
    %250 = vmatprep.subr.mxu0 0.0
    %251 = vmatpush2.msra.mxu0 0.0
    %252 = vmatprep.subr.mxu0 0.0
    %253 = vmatpush2.msra.mxu0 0.0
    %254 = vmatprep.subr.mxu0 0.0
    %255 = vmatpush2.msra.mxu0 0.0
    %256 = vmatprep.subr.mxu0 0.0
    %257 = vmatpush2.msra.mxu0 0.0
    %258 = vmatprep.subr.mxu0 0.0
    %259 = vmatpush2.msra.mxu0 0.0
    %260 = vmatprep.subr.mxu0 0.0
    %261 = vmatpush2.msra.mxu0 0.0
    %262 = vmatprep.mubr.f32.mxu0 0.0
    %263 = vmatmul.mubr.f32.gmra.mxu0 %v174
    %v264 = vpop.f32.mrf.mxu0
    %v265 = vadd.f32 %v196, %v264
    %v266 = vpop.f32.mrf.mxu0
    %267 = vdwg.mxu0
    %v268 = vmax.f32 %v265, 0.0
    %v269 = vld [vmem:[#allocation9] sm:$0xff]
    %v270 = vld [vmem:[#allocation9 + $0x8] sm:$0xff]
    %v271 = vld [vmem:[#allocation9 + $0x10] sm:$0xff]
    %v272 = vld [vmem:[#allocation9 + $0x18] sm:$0xff]
    %v273 = vld [vmem:[#allocation9 + $0x20] sm:$0xff]
    %v274 = vld [vmem:[#allocation9 + $0x28] sm:$0xff]
    %v275 = vld [vmem:[#allocation9 + $0x30] sm:$0xff]
    %v276 = vld [vmem:[#allocation9 + $0x38] sm:$0xff]
    %v277 = vld [vmem:[#allocation9 + $0x40] sm:$0xff]
    %v278 = vld [vmem:[#allocation9 + $0x48] sm:$0xff]
    %v279 = vld [vmem:[#allocation9 + $0x50] sm:$0xff]
    %v280 = vld [vmem:[#allocation9 + $0x58] sm:$0xff]
    %v281 = vld [vmem:[#allocation9 + $0x60] sm:$0xff]
    %v282 = vld [vmem:[#allocation9 + $0x68] sm:$0xff]
    %v283 = vld [vmem:[#allocation9 + $0x70] sm:$0xff]
    %v284 = vld [vmem:[#allocation9 + $0x78] sm:$0xff]
    %v285 = vld [vmem:[%s6] sm:$0x1]
    %v287 = vlaneseq
    %v288 = vshrl.u32 %v287, 7
    %v289 = vsub.s32 0, %v288
    %v290 = vrot.slane %v285, %v289
    %292 = vmatprep.subr.mxu0 0.0
    %293 = vmatpush1.msra.mxu0 %v284
    %294 = vmatprep.subr.mxu0 0.0
    %295 = vmatpush1.msra.mxu0 %v283
    %296 = vmatprep.subr.mxu0 0.0
    %297 = vmatpush1.msra.mxu0 %v282
    %298 = vmatprep.subr.mxu0 0.0
    %299 = vmatpush1.msra.mxu0 %v281
    %300 = vmatprep.subr.mxu0 0.0
    %301 = vmatpush1.msra.mxu0 %v280
    %302 = vmatprep.subr.mxu0 0.0
    %303 = vmatpush1.msra.mxu0 %v279
    %304 = vmatprep.subr.mxu0 0.0
    %305 = vmatpush1.msra.mxu0 %v278
    %306 = vmatprep.subr.mxu0 0.0
    %307 = vmatpush1.msra.mxu0 %v277
    %308 = vmatprep.subr.mxu0 0.0
    %309 = vmatpush1.msra.mxu0 %v276
    %310 = vmatprep.subr.mxu0 0.0
    %311 = vmatpush1.msra.mxu0 %v275
    %312 = vmatprep.subr.mxu0 0.0
    %313 = vmatpush1.msra.mxu0 %v274
    %314 = vmatprep.subr.mxu0 0.0
    %315 = vmatpush1.msra.mxu0 %v273
    %316 = vmatprep.subr.mxu0 0.0
    %317 = vmatpush1.msra.mxu0 %v272
    %318 = vmatprep.subr.mxu0 0.0
    %319 = vmatpush1.msra.mxu0 %v271
    %320 = vmatprep.subr.mxu0 0.0
    %321 = vmatpush1.msra.mxu0 %v270
    %322 = vmatprep.subr.mxu0 0.0
    %323 = vmatpush1.msra.mxu0 %v269
    %324 = vmatprep.subr.mxu0 0.0
    %325 = vmatpush2.msra.mxu0 0.0
    %326 = vmatprep.subr.mxu0 0.0
    %327 = vmatpush2.msra.mxu0 0.0
    %328 = vmatprep.subr.mxu0 0.0
    %329 = vmatpush2.msra.mxu0 0.0
    %330 = vmatprep.subr.mxu0 0.0
    %331 = vmatpush2.msra.mxu0 0.0
    %332 = vmatprep.subr.mxu0 0.0
    %333 = vmatpush2.msra.mxu0 0.0
    %334 = vmatprep.subr.mxu0 0.0
    %335 = vmatpush2.msra.mxu0 0.0
    %336 = vmatprep.subr.mxu0 0.0
    %337 = vmatpush2.msra.mxu0 0.0
    %338 = vmatprep.subr.mxu0 0.0
    %339 = vmatpush2.msra.mxu0 0.0
    %340 = vmatprep.subr.mxu0 0.0
    %341 = vmatpush2.msra.mxu0 0.0
    %342 = vmatprep.subr.mxu0 0.0
    %343 = vmatpush2.msra.mxu0 0.0
    %344 = vmatprep.subr.mxu0 0.0
    %345 = vmatpush2.msra.mxu0 0.0
    %346 = vmatprep.subr.mxu0 0.0
    %347 = vmatpush2.msra.mxu0 0.0
    %348 = vmatprep.subr.mxu0 0.0
    %349 = vmatpush2.msra.mxu0 0.0
    %350 = vmatprep.subr.mxu0 0.0
    %351 = vmatpush2.msra.mxu0 0.0
    %352 = vmatprep.subr.mxu0 0.0
    %353 = vmatpush2.msra.mxu0 0.0
    %354 = vmatprep.subr.mxu0 0.0
    %355 = vmatpush2.msra.mxu0 0.0
    %356 = vmatprep.mubr.f32.mxu0 0.0
    %357 = vmatmul.mubr.f32.gmra.mxu0 %v268
    %v358 = vpop.f32.mrf.mxu0
    %v359 = vadd.f32 %v290, %v358
    %v360 = vpop.f32.mrf.mxu0
    %361 = vdwg.mxu0
    %v362 = vlaneseq
    %v363 = vand.u32 %v362, 127
    %vm364 = vcmp.ge.s32.totalorder %v363, 64
    %vm365 = vcmp.lt.s32.totalorder %v363, 68
    %vm366 = vmand %vm364, %vm365
    %v367 = vtanh.pop %v359
    %v368 = vsel %vm366, %v367, %v359
    %v369 = vadd.f32 %v174, %v368
    %370 = vst [vmem:[%s7] sm:$0xff] %v369
    // Predicated region
    $region50: #{ppg_actor_critic_forward.1} parent=1 // pred_check
      _
    $region51: #{ppg_actor_critic_forward.1} parent=1 // pred_check_branch
      %372 = sbr.rel (0) target = $region53
    $region52: #{ppg_actor_critic_forward.1} parent=1 // pred_region
      _
    $region53: #{ppg_actor_critic_forward.1} parent=1 // pred_fallthru
      _
    // Predicated region
    $region54: #{ppg_actor_critic_forward.1} parent=1 // pred_check
      _
    $region55: #{ppg_actor_critic_forward.1} parent=1 // pred_check_branch
      %374 = sbr.rel (0) target = $region57
    $region56: #{ppg_actor_critic_forward.1} parent=1 // pred_region
      _
    $region57: #{ppg_actor_critic_forward.1} parent=1 // pred_fallthru
      _
    %375 = vsyncpa [#allocation3], 1
    %376 = vsyncpa [#allocation5], 1
    %377 = vsyncpa [#allocation8], 1

</llo_original>
